<compile_context>
chip_gen: v5e
topology: v5e:2x2
jax: 0.10.0
libtpu: 0.0.40
codegen_flags: <defaults>
</compile_context>

<pallas_src>
import jax
import jax.numpy as jnp
from jax.experimental import pallas as pl
from jax.experimental.pallas import tpu as pltpu


def _build_pe(d_model: int, max_len: int = 5000) -> jnp.ndarray:
    """Deterministic buffer init, matching PyTorch __init__ exactly: (max_len, 1, d_model) f32."""
    position = jnp.arange(0, max_len, dtype=jnp.float32)[:, None]          # (max_len, 1)
    div_term = jnp.exp(
        jnp.arange(0, d_model, 2, dtype=jnp.float32)
        * (-jnp.log(jnp.float32(10000.0)) / d_model)
    )                                                                       # (d_model//2,)
    pe = jnp.zeros((max_len, d_model), dtype=jnp.float32)
    pe = pe.at[:, 0::2].set(jnp.sin(position * div_term))
    pe = pe.at[:, 1::2].set(jnp.cos(position * div_term))
    # unsqueeze(0).transpose(0, 1) -> (max_len, 1, d_model)
    return pe[:, None, :]


def init_positional_encoding(d_model: int, batch: int, max_len: int = 5000,
                             dtype=jnp.float32) -> jnp.ndarray:
    """One-time init: pre-broadcast pe over batch and pre-cast to the activation dtype.

    Note: a bf16 `dtype` means the add runs in bf16 (vs PyTorch's f32 buffer);
    negligible for positional encodings but documented per review.
    """
    pe = _build_pe(d_model, max_len)                       # (max_len, 1, D) f32
    return jnp.broadcast_to(pe, (max_len, batch, d_model)).astype(dtype)   # (max_len, B, D)


def _pe_add_kernel(x_ref, pe_ref, o_ref):
    # Lane-dense 2D tiles: (ts, cols) with cols a multiple of 128 (or == full last dim).
    o_ref[...] = x_ref[...] + pe_ref[...]


def _lane_dense_cols(total_elems: int, d_model: int) -> int:
    """Pick a lane-dense last dim (multiple of 128) for the flattened 2D view."""
    for c in (512, 256, 128):
        if total_elems % c == 0:
            return c
    return d_model  # fallback: keep D as the lane dim (block == full last dim)


def _choose_rows_per_block(rows: int, cols: int, itemsize: int,
                           vmem_budget_bytes: int) -> int:
    """Largest row-tile under a double-buffered VMEM budget, sublane-aligned, >=2 grid steps."""
    sub_mult = max(1, 32 // itemsize)          # 8 (f32), 16 (bf16), 32 (int8/fp8)
    # Resident bytes per row: x-in + out + pe tiles, x2 pipeline buffers each.
    bytes_per_row = 2 * 3 * cols * itemsize
    ts = max(1, vmem_budget_bytes // bytes_per_row)
    # v7x megacore: keep >= 2 grid steps whenever the row count allows, so both TCs get work.
    if rows >= 2 * sub_mult:
        ts = min(ts, pl.cdiv(rows, 2))
    ts = min(int(ts), rows)
    if ts >= sub_mult:
        ts = (ts // sub_mult) * sub_mult       # aligned, unmasked sublane tiles
    return max(ts, 1)


def positional_encoding_forward(
    x: jnp.ndarray,
    pe_bcast: jnp.ndarray,
    *,
    vmem_budget_bytes: int = 16 * 1024 * 1024,
) -> jnp.ndarray:
    """x: (S, B, D); pe_bcast: (max_len, B, D) from init_positional_encoding.

    Returns (S, B, D) = x + pe[:S] (broadcast over batch, done via the
    pre-broadcast buffer).
    """
    S, B, D = x.shape
    assert pe_bcast.shape[1] == B and pe_bcast.shape[2] == D, "pe buffer/batch mismatch"
    pe_slice = pe_bcast[:S]                    # (S, B, D), already cast + broadcast at init

    # Contiguous lane-dense 2D view shared by x, pe and the output.
    total = S * B * D
    cols = _lane_dense_cols(total, D)
    rows = total // cols
    x2 = x.reshape(rows, cols)
    pe2 = pe_slice.reshape(rows, cols)

    itemsize = jnp.dtype(x.dtype).itemsize
    ts = _choose_rows_per_block(rows, cols, itemsize, vmem_budget_bytes)
    grid = (pl.cdiv(rows, ts),)

    out2 = pl.pallas_call(
        _pe_add_kernel,
        out_shape=jax.ShapeDtypeStruct((rows, cols), x.dtype),
        grid_spec=pltpu.PrefetchScalarGridSpec(
            num_scalar_prefetch=0,
            grid=grid,
            in_specs=[
                pl.BlockSpec((ts, cols), lambda i: (i, 0)),
                pl.BlockSpec((ts, cols), lambda i: (i, 0)),
            ],
            out_specs=pl.BlockSpec((ts, cols), lambda i: (i, 0)),
        ),
        compiler_params=pltpu.CompilerParams(
            # Row axis stays parallel so v7x's 2 TensorCores can split the >=2-step grid.
            dimension_semantics=("parallel",),
            # Headroom under v7x's 64 MiB physical VMEM; fine on v5e/v6e too.
            vmem_limit_bytes=32 * 1024 * 1024,
        ),
    )(x2, pe2)

    return out2.reshape(S, B, D)


if __name__ == "__main__":
    D = 32
    B = 2
    MAX_LEN = 256  # keep the buffer small for the test (PyTorch default 5000)

    pe_f32 = _build_pe(D, max_len=MAX_LEN)                               # reference buffer
    pe_bcast = init_positional_encoding(D, B, max_len=MAX_LEN, dtype=jnp.float32)

    key = jax.random.PRNGKey(0)
    k1, k2 = jax.random.split(key)

    # Module-spec shape: seq=8, batch=2, d_model=32 -> single lane-dense (1, 512) block.
    S1 = 8
    x1 = jax.random.normal(k1, (S1, B, D), dtype=jnp.float32)
    out1 = jax.block_until_ready(positional_encoding_forward(x1, pe_bcast))
    ref1 = x1 + pe_f32[:S1]
    assert out1.shape == (S1, B, D)
    assert jnp.allclose(out1, ref1, atol=1e-6), "mismatch vs reference (small)"

    # Multi-block path: seq=128 -> (16, 512) lane-dense view, 2 grid steps of 8 rows each.
    S2 = 128
    x2 = jax.random.normal(k2, (S2, B, D), dtype=jnp.float32)
    out2 = jax.block_until_ready(positional_encoding_forward(x2, pe_bcast))
    ref2 = x2 + pe_f32[:S2]
    assert out2.shape == (S2, B, D)
    assert jnp.allclose(out2, ref2, atol=1e-6), "mismatch vs reference (tiled)"

    print("KERNEL_OK")
</pallas_src>

<mosaic_0001>
module attributes {stable_mosaic.version = 11 : i64} {
  func.func @_pe_add_kernel(%arg0: i32, %arg1: memref<1x512xf32, #tpu.memory_space<vmem>>, %arg2: memref<1x512xf32, #tpu.memory_space<vmem>>, %arg3: memref<1x512xf32, #tpu.memory_space<vmem>>) attributes {dimension_semantics = [#tpu.dimension_semantics<parallel>], iteration_bounds = array<i64: 1>, scalar_prefetch = 0 : i64, scratch_operands = 0 : i64, tpu.core_type = #tpu.core_type<tc>, window_params = [{transform_indices = @transform_0, window_bounds = array<i64: 1, 512>}, {transform_indices = @transform_1, window_bounds = array<i64: 1, 512>}, {transform_indices = @transform_2, window_bounds = array<i64: 1, 512>}]} {
    %c0 = arith.constant 0 : index
    %c0_0 = arith.constant 0 : index
    %0 = vector.load %arg1[%c0, %c0_0] : memref<1x512xf32, #tpu.memory_space<vmem>>, vector<1x512xf32>
    %c0_1 = arith.constant 0 : index
    %c0_2 = arith.constant 0 : index
    %1 = vector.load %arg2[%c0_1, %c0_2] : memref<1x512xf32, #tpu.memory_space<vmem>>, vector<1x512xf32>
    %2 = arith.addf %0, %1 : vector<1x512xf32>
    %c0_3 = arith.constant 0 : index
    %c0_4 = arith.constant 0 : index
    %3 = vector.load %arg3[%c0_3, %c0_4] : memref<1x512xf32, #tpu.memory_space<vmem>>, vector<1x512xf32>
    tpu.vector_store %arg3[%c0_3, %c0_4], %2 {strides = array<i32>} : memref<1x512xf32, #tpu.memory_space<vmem>>, vector<1x512xf32>,
    return
  }
  func.func @transform_0(%arg0: i32) -> (i32, i32) {
    %c0_i32 = arith.constant 0 : i32
    %c0_i32_0 = arith.constant 0 : i32
    return %arg0, %c0_i32 : i32, i32
  }
  func.func @transform_1(%arg0: i32) -> (i32, i32) {
    %c0_i32 = arith.constant 0 : i32
    %c0_i32_0 = arith.constant 0 : i32
    return %arg0, %c0_i32 : i32, i32
  }
  func.func @transform_2(%arg0: i32) -> (i32, i32) {
    %c0_i32 = arith.constant 0 : i32
    %c0_i32_0 = arith.constant 0 : i32
    return %arg0, %c0_i32 : i32, i32
  }
}

</mosaic_0001>

<llo_original>
// kernel: tpu_custom_call.1
$region0: #{tpu_custom_call.1}
  #allocation0 [shape = 'u32[]', space=smem, size = 0x4, offset = 0x4, fixed_abs, tag = 'smem constant byte address 0x4 - core index']
  #allocation1 [shape = 'u32[72,128]{1,0:T(1,128)}', space=vmem, size = 0x9000, scoped, tag = 'internal scratch']
  %s0 = inlined_call_operand.hbm [shape: f32[1,512], index: 0, kind: input, shape index: {}]
  %s1 = inlined_call_operand.hbm [shape: f32[1,512], index: 1, kind: input, shape index: {}]
  %s2 = inlined_call_operand.hbm [shape: f32[1,512], index: 2, kind: output, shape index: {}]
  %s3 = sld [smem:[#allocation0]]
  $region26: #{tpu_custom_call.1} parent=0
    _
  %s5 = ssub.s32 1, %s3
  %s6 = scalar_select 0, %s5, %s3
  $region1: #{tpu_custom_call.1} parent=0
    #allocation2 [shape = 'u8[2048]{0}', space=vmem, size = 0x800, scoped, tag = 'input window, operand 0, single buffered']
    #allocation3 [shape = 's32[1]{0}', space=sflag, size = 0x4, scoped, tag = 'scoped memory for tpu_custom_call.1']
    #allocation4 [shape = 's32[1]{0}', space=sflag, size = 0x4, scoped, tag = 'scoped memory for tpu_custom_call.1']
    #allocation5 [shape = 'u8[2048]{0}', space=vmem, size = 0x800, scoped, tag = 'input window, operand 1, single buffered']
    #allocation6 [shape = 's32[1]{0}', space=sflag, size = 0x4, scoped, tag = 'scoped memory for tpu_custom_call.1']
    #allocation7 [shape = 'u8[2048]{0}', space=vmem, size = 0x800, scoped, tag = 'output window, operand 0, single buffered']
    %7 = vsyncpa [#allocation3], 0
    %8 = vsyncpa [#allocation6], 0
    %9 = vsyncpa [#allocation4], 0
    // Predicated region
    $region2: #{tpu_custom_call.1} parent=1 // pred_check
      _
    $region3: #{tpu_custom_call.1} parent=1 // pred_check_branch
      %11 = sbr.rel (0) target = $region5
    $region4: #{tpu_custom_call.1} parent=1 // pred_region
      %13 = vsyncadd [#allocation3], 0
      %s15 = sshll.u32 %s0, 4
      %s16 = int_to_ptr.hbm [resolvable:$true] %s15
      %s17 = sshll.u32 [#allocation2], 4
      %s18 = int_to_ptr.vmem [resolvable:$true] %s17
      %20 = dma.hbm_to_vmem [thread:$0]  %s16, 64, %s18, [#allocation3]
    $region5: #{tpu_custom_call.1} parent=1 // pred_fallthru
      _
    // Predicated region
    $region6: #{tpu_custom_call.1} parent=1 // pred_check
      _
    $region7: #{tpu_custom_call.1} parent=1 // pred_check_branch
      %22 = sbr.rel (0) target = $region9
    $region8: #{tpu_custom_call.1} parent=1 // pred_region
      %24 = vsyncadd [#allocation6], 0
      %s26 = sshll.u32 %s1, 4
      %s27 = int_to_ptr.hbm [resolvable:$true] %s26
      %s28 = sshll.u32 [#allocation5], 4
      %s29 = int_to_ptr.vmem [resolvable:$true] %s28
      %31 = dma.hbm_to_vmem [thread:$0]  %s27, 64, %s29, [#allocation6]
    $region9: #{tpu_custom_call.1} parent=1 // pred_fallthru
      _
    // Predicated region
    $region10: #{tpu_custom_call.1} parent=1 // pred_check
      _
    $region11: #{tpu_custom_call.1} parent=1 // pred_check_branch
      %33 = sbr.rel (0) target = $region13
    $region12: #{tpu_custom_call.1} parent=1 // pred_region
      %35 = dma.done [#allocation3], 64
    $region13: #{tpu_custom_call.1} parent=1 // pred_fallthru
      _
    // Predicated region
    $region14: #{tpu_custom_call.1} parent=1 // pred_check
      _
    $region15: #{tpu_custom_call.1} parent=1 // pred_check_branch
      %37 = sbr.rel (0) target = $region17
    $region16: #{tpu_custom_call.1} parent=1 // pred_region
      %39 = dma.done [#allocation6], 64
    $region17: #{tpu_custom_call.1} parent=1 // pred_fallthru
      _
    %v40 = vld [vmem:[#allocation2] sm:$0xf]
    %v41 = vld [vmem:[#allocation5] sm:$0xf]
    %v42 = vadd.f32 %v40, %v41
    %v43 = vlaneseq
    %vm44 = vcmp.ge.s32.totalorder %v43, 0
    %vm45 = vcmp.lt.s32.totalorder %v43, 512
    %vm46 = vmand %vm44, %vm45
    %47 = vst.msk [vmem:[#allocation7] sm:$0xf] %vm46, %v42
    // Predicated region
    $region18: #{tpu_custom_call.1} parent=1 // pred_check
      _
    $region19: #{tpu_custom_call.1} parent=1 // pred_check_branch
      %49 = sbr.rel (0) target = $region21
    $region20: #{tpu_custom_call.1} parent=1 // pred_region
      %51 = vsyncadd [#allocation4], 0
      %s53 = sshll.u32 [#allocation7], 4
      %s54 = int_to_ptr.vmem [resolvable:$true] %s53
      %s55 = sshll.u32 %s2, 4
      %s56 = int_to_ptr.hbm [resolvable:$true] %s55
      %58 = dma.vmem_to_hbm [thread:$0]  %s54, 64, %s56, [#allocation4]
    $region21: #{tpu_custom_call.1} parent=1 // pred_fallthru
      _
    // Predicated region
    $region22: #{tpu_custom_call.1} parent=1 // pred_check
      _
    $region23: #{tpu_custom_call.1} parent=1 // pred_check_branch
      %60 = sbr.rel (0) target = $region25
    $region24: #{tpu_custom_call.1} parent=1 // pred_region
      %62 = dma.done [#allocation4], 64
    $region25: #{tpu_custom_call.1} parent=1 // pred_fallthru
      _
    %63 = vsyncpa [#allocation3], 1
    %64 = vsyncpa [#allocation6], 1
    %65 = vsyncpa [#allocation4], 1

</llo_original>
